<compile_context>
chip_gen: v7x
topology: tpu7x:2x2x1
jax: 0.10.0
libtpu: 0.0.40
codegen_flags: <defaults>
</compile_context>

<pallas_src>
import jax
import jax.numpy as jnp
from jax import lax
from jax.experimental import pallas as pl
from jax.experimental.pallas import tpu as pltpu

_MIB = 1024 * 1024


def _round_up(x, m):
    return ((x + m - 1) // m) * m


def _pick_chunk(tf):
    # Largest d_ff chunk (multiple of 128, <= 512) that divides the tf block.
    for c in (512, 256, 128):
        if tf % c == 0:
            return c
    return 128


def _pad2d(a, rows, cols):
    if rows == 0 and cols == 0:
        return a
    return jnp.pad(a, ((0, rows), (0, cols)))


def _cast(a, dtype):
    return a if a.dtype == jnp.dtype(dtype) else a.astype(dtype)


def _vmem_physical_bytes():
    """Physical per-TensorCore VMEM; falls back to the v7x-safe 64 MiB."""
    try:
        info = pltpu.get_tpu_info()
        for attr in ("vmem_capacity_bytes", "vmem_bytes", "vmem_size_bytes"):
            v = getattr(info, attr, None)
            if v:
                return int(v)
    except Exception:
        pass
    return 64 * _MIB


def _make_ffn_kernel(num_f, chunk):
    """num_f: #d_ff grid steps (trace-time constant); chunk: in-kernel d_ff chunk size."""

    def kernel(x_ref, w1_ref, b1_ref, w2_ref, b2_ref, o_ref, *scratch):
        # f32 accumulator: dedicated scratch only when the output dtype is not f32;
        # otherwise accumulate directly into the (f-resident) output block.
        acc_ref = scratch[0] if scratch else o_ref
        x = x_ref[...]
        tf = w1_ref.shape[1]
        n_chunks = tf // chunk

        def chunk_out(c, *, hint=True):
            s = c * chunk
            if hint:
                s = pl.multiple_of(s, chunk)
            # hidden = relu(x @ W1[:, chunk] + b1[chunk]): f32 accumulate on the MXU,
            # bias + ReLU in f32 on the VPU.
            h = jnp.dot(x, w1_ref[:, pl.ds(s, chunk)],
                        preferred_element_type=jnp.float32)
            h = jnp.maximum(h + b1_ref[:, pl.ds(s, chunk)], 0.0)
            # Dropout(p=0.1) is identity in eval/inference mode.
            # TODO(synk): training-mode dropout would use pltpu.prng_seed + prng_random_bits.
            return jnp.dot(h.astype(w2_ref.dtype), w2_ref[pl.ds(s, chunk), :],
                           preferred_element_type=jnp.float32)

        partial = chunk_out(0, hint=False)
        if n_chunks > 1:
            partial = lax.fori_loop(1, n_chunks, lambda c, a: a + chunk_out(c),
                                    partial, unroll=True)

        if num_f == 1:
            # Weights fully resident: single pass, write the output directly.
            o_ref[...] = (partial + b2_ref[...]).astype(o_ref.dtype)
        else:
            f = pl.program_id(1)
            last = num_f - 1

            @pl.when(f == 0)
            def _():
                acc_ref[...] = partial                      # no zero-init / RMW

            @pl.when(jnp.logical_and(f > 0, f < last))
            def _():
                acc_ref[...] = acc_ref[...] + partial

            @pl.when(f == last)
            def _():
                o_ref[...] = (acc_ref[...] + partial + b2_ref[...]).astype(o_ref.dtype)

    return kernel


def _select_tiles(M, d_model_p, d_ff_p, *, act_bytes, w_bytes, out_bytes,
                  need_acc_if_streaming, sub, budget):
    """Pick (tm, tf).  tf == d_ff_p means the weights stay fully VMEM-resident."""

    def row_tile(tm):
        return _round_up(min(tm, _round_up(M, sub)), sub)

    def est(tm, tf, nbuf_w, need_acc):
        chunk = _pick_chunk(tf)
        e = 2 * tm * d_model_p * act_bytes           # x tile (double buffered)
        e += 2 * tm * d_model_p * out_bytes          # out tile (double buffered)
        if need_acc:
            e += tm * d_model_p * 4                  # f32 accumulator scratch
        e += tm * d_model_p * 4                      # live f32 partial
        e += 2 * tm * chunk * 4                      # hidden chunk (f32 + cast copy)
        e += nbuf_w * 2 * d_model_p * tf * w_bytes   # W1 + W2 block(s)
        e += nbuf_w * tf * 4 + d_model_p * 4         # biases (f32)
        return e

    # Pass 1: weight-resident configs (W1/W2 fetched from HBM exactly once),
    # preferred over streaming even at a smaller row tile.
    for tm in (512, 256, 128, 64):
        tm = row_tile(tm)
        if est(tm, d_ff_p, nbuf_w=1, need_acc=False) <= budget:
            return tm, d_ff_p

    # Pass 2: stream d_ff blocks (weights re-read once per row tile), biggest tm first.
    for tm in (512, 256, 128, 64, 32, 16, 8):
        tm = row_tile(tm)
        tf = d_ff_p
        while tf > 128:
            tf = _round_up(tf // 2, 128)
            if est(tm, tf, nbuf_w=2, need_acc=need_acc_if_streaming) <= budget:
                return tm, tf
    return row_tile(sub), 128


def feed_forward(x, w1, b1, w2, b2, *, mxu_dtype=None, _debug_tiles=None):
    """Fused FFN: relu(x @ w1 + b1) @ w2 + b2 (dropout is identity in eval mode).

    x: (batch, seq, d_model); w1: (d_model, d_ff); b1: (d_ff,);
    w2: (d_ff, d_model); b2: (d_model,).
    mxu_dtype optionally lowers the MXU operand dtype (e.g. jnp.bfloat16); matmuls
    always accumulate in f32 and the result is returned in x.dtype.

    NOTE: the padded/cast weight tensors below are pure functions of the parameters;
    for repeated calls they can be precomputed once and cached by the caller to avoid
    an extra HBM pass per call.
    """
    batch, seq, d_model = x.shape
    d_ff = w1.shape[1]
    M = batch * seq
    out_dtype = jnp.dtype(x.dtype)
    mxu_dtype = jnp.dtype(mxu_dtype) if mxu_dtype is not None else out_dtype
    out_is_f32 = out_dtype == jnp.float32

    # Row-tile granularity: 8 sublanes for 4-byte operands, 16 for packed bf16.
    sub = 8 if mxu_dtype.itemsize >= 4 else 16

    # Lane-dense feature padding (multiples of 128).
    d_model_p = _round_up(d_model, 128)
    d_ff_p0 = _round_up(d_ff, 128)

    # Generation-aware VMEM sizing: limit just below physical, tile budget below that.
    phys = _vmem_physical_bytes()
    vmem_limit = max(32 * _MIB, min(phys - 8 * _MIB, 120 * _MIB))
    budget = max(16 * _MIB, vmem_limit - 8 * _MIB)

    if _debug_tiles is not None:
        tm, tf = _debug_tiles
        tm = _round_up(tm, sub)
        tf = _round_up(min(tf, d_ff_p0), 128)
    else:
        tm, tf = _select_tiles(
            M, d_model_p, d_ff_p0,
            act_bytes=mxu_dtype.itemsize, w_bytes=mxu_dtype.itemsize,
            out_bytes=out_dtype.itemsize,
            need_acc_if_streaming=not out_is_f32, sub=sub, budget=budget)

    d_ff_p = _round_up(d_ff, tf)
    num_f = d_ff_p // tf
    resident = num_f == 1
    chunk = _pick_chunk(tf)

    M_p = _round_up(M, tm)
    # v7x has 2 TensorCores: make sure the "parallel" row axis has >= 2 tiles.
    while M_p // tm < 2 and tm >= 2 * sub:
        tm = _round_up(tm // 2, sub)
        M_p = _round_up(M, tm)

    # Pad (skipped when already aligned) and cast operands. Padding is zero, so padded
    # d_ff columns give relu(0 + 0) = 0 and contribute nothing to the second matmul.
    x2 = _cast(_pad2d(x.reshape(M, d_model), M_p - M, d_model_p - d_model), mxu_dtype)
    w1_p = _cast(_pad2d(w1, d_model_p - d_model, d_ff_p - d_ff), mxu_dtype)
    w2_p = _cast(_pad2d(w2, d_ff_p - d_ff, d_model_p - d_model), mxu_dtype)
    b1_p = _cast(_pad2d(b1.reshape(1, d_ff), 0, d_ff_p - d_ff), jnp.float32)
    b2_p = _cast(_pad2d(b2.reshape(1, d_model), 0, d_model_p - d_model), jnp.float32)

    def wspec(shape, index_map):
        if resident:
            # Block never changes across the grid -> fetched from HBM once, single buffer.
            return pl.BlockSpec(shape, index_map, pipeline_mode=pl.Buffered(1))
        return pl.BlockSpec(shape, index_map)

    scratch_shapes = []
    if num_f > 1 and not out_is_f32:
        scratch_shapes.append(pltpu.VMEM((tm, d_model_p), jnp.float32))

    flops = 4 * M_p * d_model_p * d_ff_p
    weight_passes = 1 if resident else (M_p // tm)
    bytes_accessed = (
        x2.size * x2.dtype.itemsize
        + (w1_p.size + w2_p.size) * mxu_dtype.itemsize * weight_passes
        + (b1_p.size + b2_p.size) * 4
        + M_p * d_model_p * out_dtype.itemsize)

    out = pl.pallas_call(
        _make_ffn_kernel(num_f, chunk),
        out_shape=jax.ShapeDtypeStruct((M_p, d_model_p), out_dtype),
        grid_spec=pltpu.PrefetchScalarGridSpec(
            num_scalar_prefetch=0,
            grid=(M_p // tm, num_f),
            in_specs=[
                pl.BlockSpec((tm, d_model_p), lambda i, f: (i, 0)),
                wspec((d_model_p, tf), lambda i, f: (0, f)),
                wspec((1, tf), lambda i, f: (0, f)),
                wspec((tf, d_model_p), lambda i, f: (f, 0)),
                pl.BlockSpec((1, d_model_p), lambda i, f: (0, 0),
                             pipeline_mode=pl.Buffered(1)),
            ],
            out_specs=pl.BlockSpec((tm, d_model_p), lambda i, f: (i, 0)),
            scratch_shapes=tuple(scratch_shapes),
        ),
        compiler_params=pltpu.CompilerParams(
            dimension_semantics=("parallel", "arbitrary"),
            vmem_limit_bytes=int(vmem_limit)),
        cost_estimate=pl.CostEstimate(flops=int(flops), transcendentals=0,
                                      bytes_accessed=int(bytes_accessed)),
    )(x2, w1_p, b1_p, w2_p, b2_p)

    if M_p != M or d_model_p != d_model:
        out = out[:M, :d_model]
    return out.reshape(batch, seq, d_model)


def _init_linear(key, fan_in, fan_out):
    # Mimic PyTorch nn.Linear default init: U(-1/sqrt(fan_in), 1/sqrt(fan_in)).
    kw, kb = jax.random.split(key)
    bound = 1.0 / (fan_in ** 0.5)
    # Stored transposed vs PyTorch (.weight is (out, in)); here (in, out) for x @ W.
    w = jax.random.uniform(kw, (fan_in, fan_out), jnp.float32, -bound, bound)
    b = jax.random.uniform(kb, (fan_out,), jnp.float32, -bound, bound)
    return w, b


def ffn_reference(x, w1, b1, w2, b2):
    # Pure-JAX reference (dropout identity in eval mode), highest matmul precision.
    h = jnp.maximum(jnp.dot(x, w1, precision=lax.Precision.HIGHEST) + b1, 0.0)
    return jnp.dot(h, w2, precision=lax.Precision.HIGHEST) + b2


if __name__ == "__main__":
    key = jax.random.PRNGKey(0)

    # --- Small config consistent with the module: d_model=32, d_ff=64. ---
    batch, seq, d_model, d_ff = 2, 8, 32, 64
    kx, k1, k2 = jax.random.split(key, 3)
    x = jax.random.normal(kx, (batch, seq, d_model), jnp.float32)
    w1, b1 = _init_linear(k1, d_model, d_ff)
    w2, b2 = _init_linear(k2, d_ff, d_model)
    ref = ffn_reference(x, w1, b1, w2, b2)

    # 1) f32 MXU path (weights resident): matches the reference.
    out = jax.block_until_ready(feed_forward(x, w1, b1, w2, b2))
    assert out.shape == (batch, seq, d_model)
    assert jnp.allclose(out, ref, atol=1e-5, rtol=1e-5)

    # 2) bf16 MXU operands (f32 accumulate): loose tolerance vs the f32 reference.
    out_bf16 = jax.block_until_ready(
        feed_forward(x, w1, b1, w2, b2, mxu_dtype=jnp.bfloat16))
    assert out_bf16.shape == (batch, seq, d_model)
    assert jnp.allclose(out_bf16, ref, atol=5e-2, rtol=5e-2)

    # --- Larger d_ff to exercise in-kernel d_ff chunking and the streaming paths. ---
    batch2, seq2, dm2, df2 = 2, 32, 128, 1536
    k3, k4, k5 = jax.random.split(jax.random.PRNGKey(1), 3)
    x2 = jax.random.normal(k3, (batch2, seq2, dm2), jnp.float32)
    w1b, b1b = _init_linear(k4, dm2, df2)
    w2b, b2b = _init_linear(k5, df2, dm2)
    ref2 = ffn_reference(x2, w1b, b1b, w2b, b2b)

    # 3) Auto tiling -> weights resident, hidden computed in 512-wide chunks (fori_loop).
    out2 = jax.block_until_ready(feed_forward(x2, w1b, b1b, w2b, b2b))
    assert jnp.allclose(out2, ref2, atol=1e-3, rtol=1e-3)

    # 4) Forced d_ff streaming (num_f=2, 3 chunks per step), f32 accumulation directly
    #    in the resident output block (no scratch).
    out3 = jax.block_until_ready(
        feed_forward(x2, w1b, b1b, w2b, b2b, _debug_tiles=(32, 768)))
    assert jnp.allclose(out3, ref2, atol=1e-3, rtol=1e-3)

    # 5) Forced streaming with a bf16 output (exercises the f32 scratch accumulator).
    out4 = jax.block_until_ready(
        feed_forward(x2.astype(jnp.bfloat16), w1b, b1b, w2b, b2b,
                     _debug_tiles=(32, 256)))
    assert out4.dtype == jnp.bfloat16
    assert jnp.allclose(out4.astype(jnp.float32), ref2, atol=1e-1, rtol=1e-1)

    print("KERNEL_OK")
</pallas_src>

<mosaic_0001>
module attributes {stable_mosaic.version = 11 : i64} {
  func.func @kernel(%arg0: i32, %arg1: i32, %arg2: memref<8x128xf32, #tpu.memory_space<vmem>>, %arg3: memref<128x128xf32, #tpu.memory_space<vmem>>, %arg4: memref<1x128xf32, #tpu.memory_space<vmem>>, %arg5: memref<128x128xf32, #tpu.memory_space<vmem>>, %arg6: memref<1x128xf32, #tpu.memory_space<vmem>>, %arg7: memref<8x128xf32, #tpu.memory_space<vmem>>) attributes {dimension_semantics = [#tpu.dimension_semantics<parallel>, #tpu.dimension_semantics<arbitrary>], iteration_bounds = array<i64: 2, 1>, scalar_prefetch = 0 : i64, scratch_operands = 0 : i64, tpu.core_type = #tpu.core_type<tc>, window_params = [{transform_indices = @transform_0, window_bounds = array<i64: 8, 128>}, {pipeline_mode = #tpu.pipeline_mode<synchronous>, transform_indices = @transform_1, window_bounds = array<i64: 128, 128>}, {pipeline_mode = #tpu.pipeline_mode<synchronous>, transform_indices = @transform_2, window_bounds = array<i64: 1, 128>}, {pipeline_mode = #tpu.pipeline_mode<synchronous>, transform_indices = @transform_3, window_bounds = array<i64: 128, 128>}, {pipeline_mode = #tpu.pipeline_mode<synchronous>, transform_indices = @transform_4, window_bounds = array<i64: 1, 128>}, {transform_indices = @transform_5, window_bounds = array<i64: 8, 128>}]} {
    %c0 = arith.constant 0 : index
    %c0_0 = arith.constant 0 : index
    %0 = vector.load %arg2[%c0, %c0_0] : memref<8x128xf32, #tpu.memory_space<vmem>>, vector<8x128xf32>
    %c0_1 = arith.constant 0 : index
    %c0_2 = arith.constant 0 : index
    %1 = vector.load %arg3[%c0_1, %c0_2] : memref<128x128xf32, #tpu.memory_space<vmem>>, vector<128x128xf32>
    %cst = arith.constant dense<0.000000e+00> : vector<8x128xf32>
    %2 = tpu.matmul %0, %1, %cst {dimension_numbers = #tpu.dot_dimension_numbers<[1], [0], [0], [1], [0, 0, 1, 1], [], []>} : vector<8x128xf32>, vector<128x128xf32>, vector<8x128xf32> -> vector<8x128xf32>
    %c0_3 = arith.constant 0 : index
    %c0_4 = arith.constant 0 : index
    %3 = vector.load %arg4[%c0_3, %c0_4] : memref<1x128xf32, #tpu.memory_space<vmem>>, vector<1x128xf32>
    %4 = vector.broadcast %3 : vector<1x128xf32> to vector<8x128xf32>
    %5 = arith.addf %2, %4 : vector<8x128xf32>
    %cst_5 = arith.constant 0.000000e+00 : f32
    %6 = vector.broadcast %cst_5 : f32 to vector<8x128xf32>
    %7 = arith.maximumf %5, %6 : vector<8x128xf32>
    %c0_6 = arith.constant 0 : index
    %c0_7 = arith.constant 0 : index
    %8 = vector.load %arg5[%c0_6, %c0_7] : memref<128x128xf32, #tpu.memory_space<vmem>>, vector<128x128xf32>
    %cst_8 = arith.constant dense<0.000000e+00> : vector<8x128xf32>
    %9 = tpu.matmul %7, %8, %cst_8 {dimension_numbers = #tpu.dot_dimension_numbers<[1], [0], [0], [1], [0, 0, 1, 1], [], []>} : vector<8x128xf32>, vector<128x128xf32>, vector<8x128xf32> -> vector<8x128xf32>
    %c0_9 = arith.constant 0 : index
    %c0_10 = arith.constant 0 : index
    %10 = vector.load %arg6[%c0_9, %c0_10] : memref<1x128xf32, #tpu.memory_space<vmem>>, vector<1x128xf32>
    %11 = vector.broadcast %10 : vector<1x128xf32> to vector<8x128xf32>
    %12 = arith.addf %9, %11 : vector<8x128xf32>
    %c0_11 = arith.constant 0 : index
    %c0_12 = arith.constant 0 : index
    %13 = vector.load %arg7[%c0_11, %c0_12] : memref<8x128xf32, #tpu.memory_space<vmem>>, vector<8x128xf32>
    tpu.vector_store %arg7[%c0_11, %c0_12], %12 {strides = array<i32>} : memref<8x128xf32, #tpu.memory_space<vmem>>, vector<8x128xf32>,
    return
  }
  func.func @transform_0(%arg0: i32, %arg1: i32) -> (i32, i32) {
    %c0_i32 = arith.constant 0 : i32
    %c0_i32_0 = arith.constant 0 : i32
    return %arg0, %c0_i32 : i32, i32
  }
  func.func @transform_1(%arg0: i32, %arg1: i32) -> (i32, i32) {
    %c0_i32 = arith.constant 0 : i32
    %c0_i32_0 = arith.constant 0 : i32
    return %c0_i32, %arg1 : i32, i32
  }
  func.func @transform_2(%arg0: i32, %arg1: i32) -> (i32, i32) {
    %c0_i32 = arith.constant 0 : i32
    %c0_i32_0 = arith.constant 0 : i32
    return %c0_i32, %arg1 : i32, i32
  }
  func.func @transform_3(%arg0: i32, %arg1: i32) -> (i32, i32) {
    %c0_i32 = arith.constant 0 : i32
    %c0_i32_0 = arith.constant 0 : i32
    return %arg1, %c0_i32 : i32, i32
  }
  func.func @transform_4(%arg0: i32, %arg1: i32) -> (i32, i32) {
    %c0_i32 = arith.constant 0 : i32
    %c0_i32_0 = arith.constant 0 : i32
    %c0_i32_1 = arith.constant 0 : i32
    return %c0_i32, %c0_i32_0 : i32, i32
  }
  func.func @transform_5(%arg0: i32, %arg1: i32) -> (i32, i32) {
    %c0_i32 = arith.constant 0 : i32
    %c0_i32_0 = arith.constant 0 : i32
    return %arg0, %c0_i32 : i32, i32
  }
}

</mosaic_0001>

<llo_original>
// kernel: tpu_custom_call.1
$region0: #{tpu_custom_call.1}
  #allocation0 [shape = 'u32[]', space=smem, size = 0x4, offset = 0x4, fixed_abs, tag = 'smem constant byte address 0x4 - core index']
  #allocation1 [shape = 'u32[144,128]{1,0:T(1,128)}', space=vmem, size = 0x12000, scoped, tag = 'internal scratch']
  %s0 = inlined_call_operand.hbm [shape: f32[16,128], index: 0, kind: input, shape index: {}]
  %s1 = inlined_call_operand.hbm [shape: f32[128,128], index: 1, kind: input, shape index: {}]
  %s2 = inlined_call_operand.vmem [shape: f32[1,128], index: 2, kind: input, shape index: {}]
  %s3 = inlined_call_operand.hbm [shape: f32[128,128], index: 3, kind: input, shape index: {}]
  %s4 = inlined_call_operand.vmem [shape: f32[1,128], index: 4, kind: input, shape index: {}]
  %s5 = inlined_call_operand.hbm [shape: f32[16,128], index: 5, kind: output, shape index: {}]
  %s6 = sld [smem:[#allocation0]]
  $region65: #{tpu_custom_call.1} parent=0
    _
  %s8 = ssub.s32 1, %s6
  %s9 = scalar_select 0, %s8, %s6
  $region1: #{tpu_custom_call.1} parent=0
    #allocation2 [shape = 'u8[8192]{0}', space=vmem, size = 0x2000, scoped, tag = 'input window, operand 0']
    #allocation3 [shape = 's32[2]{0}', space=sflag, size = 0x8, scoped, tag = 'scoped memory for tpu_custom_call.1']
    #allocation4 [shape = 's32[2]{0}', space=sflag, size = 0x8, scoped, tag = 'scoped memory for tpu_custom_call.1']
    #allocation5 [shape = 'u8[65536]{0}', space=vmem, size = 0x10000, scoped, tag = 'input window, operand 1, single buffered']
    #allocation6 [shape = 's32[1]{0}', space=sflag, size = 0x4, scoped, tag = 'scoped memory for tpu_custom_call.1']
    #allocation7 [shape = 'u8[65536]{0}', space=vmem, size = 0x10000, scoped, tag = 'input window, operand 3, single buffered']
    #allocation8 [shape = 'u8[8192]{0}', space=vmem, size = 0x2000, scoped, tag = 'output window, operand 0']
    %10 = vsyncpa [#allocation3], 0
    %s11 = scalar_lea.sflag [#allocation3], 1
    %12 = vsyncpa %s11, 0
    %13 = vsyncpa [#allocation6], 0
    %14 = vsyncpa [#allocation4], 0
    %s15 = scalar_lea.sflag [#allocation4], 1
    %16 = vsyncpa %s15, 0
    loop: start=0, step=1, limit=4
    $region2: #{tpu_custom_call.1} parent=1 // loop_pre_header
      _
    $region3: #{tpu_custom_call.1} parent=1 // loop_header
      %s18 = sphi 0, %s22
      %p19 = scmp.ge.s32.totalorder %s18, 4
      %s25 = sphi 0, %s37
      %s26 = sphi 0, %s33
      %s27 = sphi 0, %s25
      %s28 = sphi 0, %s26
      %s29 = sphi 0, %s27
      %s30 = sphi 0, %s28
      %s40 = sphi 0, %s42
      %s43 = sphi 0, %s40
      %s44 = sphi 0, %s43
      %s60 = sphi 0, %s44
      %s66 = sphi 0, %s68
      %s69 = sphi 0, %s66
      %s70 = sphi 0, %s69
      %s86 = sphi 0, %s70
      %s92 = sphi 0, %s94
      %s95 = sphi 0, %s92
      %s96 = sphi 0, %s95
      %s112 = sphi 0, %s96
      %s118 = sphi 0, %s120
      %s121 = sphi 0, %s118
      %s122 = sphi 0, %s121
      %s138 = sphi 0, %s122
      %s142 = sphi 0, %s142
      %s144 = sphi 0, %s142
      %s145 = sphi 0, %s144
      %s159 = sphi 0, %s145
      %s165 = sphi 0, %s167
      %s168 = sphi 0, %s165
      %s169 = sphi 0, %s168
      %s185 = sphi 0, %s169
    $region4: #{tpu_custom_call.1} parent=1 // loop_header_branch
      %21 = sbr.rel (%p19) target = $region8
    $region5: #{tpu_custom_call.1} parent=1 // loop_body
      %s23 = ssub.s32 %s18, 1
      %s24 = ssub.s32 %s18, 2
      %s31 = sadd.s32 1, %s26
      %p32 = scmp.ge.s32.totalorder %s31, 1
      %s33 = scalar_select %p32, 0, %s31
      %s34 = sadd.s32 1, %s25
      %s35 = scalar_select %p32, %s34, %s25
      %p36 = scmp.ge.s32.totalorder %s35, 2
      %s37 = scalar_select %p36, 0, %s35
      %s38 = ssub.s32 %s25, %s37
      %p39 = scmp.eq.s32.totalorder %s38, 0
      %s41 = sadd.s32 %s40, 1
      %s42 = scalar_select %p39, %s40, %s41
      %p45 = pneg %p39
      %p46 = scmp.eq.s32.totalorder %s18, 1
      %p47 = por %p45, %p46
      %p48 = scmp.ne.s32.totalorder %s40, %s43
      %p49 = scmp.eq.s32.totalorder %s18, 0
      %p50 = por %p48, %p49
      %p51 = scmp.ne.s32.totalorder %s40, %s43
      %p52 = scmp.eq.s32.totalorder %s23, 1
      %p53 = por %p51, %p52
      %p54 = scmp.ne.s32.totalorder %s43, %s44
      %p55 = scmp.eq.s32.totalorder %s23, 0
      %p56 = por %p54, %p55
      %p57 = scmp.ne.s32.totalorder %s43, %s44
      %p58 = scmp.eq.s32.totalorder %s24, 1
      %p59 = por %p57, %p58
      %p61 = scmp.ne.s32.totalorder %s44, %s60
      %p62 = scmp.eq.s32.totalorder %s24, 0
      %p63 = por %p61, %p62
      %s64 = ssub.s32 %s26, %s33
      %p65 = scmp.eq.s32.totalorder %s64, 0
      %s67 = sadd.s32 %s66, 1
      %s68 = scalar_select %p65, %s66, %s67
      %p71 = pneg %p65
      %p72 = scmp.eq.s32.totalorder %s18, 1
      %p73 = por %p71, %p72
      %p74 = scmp.ne.s32.totalorder %s66, %s69
      %p75 = scmp.eq.s32.totalorder %s18, 0
      %p76 = por %p74, %p75
      %p77 = scmp.ne.s32.totalorder %s66, %s69
      %p78 = scmp.eq.s32.totalorder %s23, 1
      %p79 = por %p77, %p78
      %p80 = scmp.ne.s32.totalorder %s69, %s70
      %p81 = scmp.eq.s32.totalorder %s23, 0
      %p82 = por %p80, %p81
      %p83 = scmp.ne.s32.totalorder %s69, %s70
      %p84 = scmp.eq.s32.totalorder %s24, 1
      %p85 = por %p83, %p84
      %p87 = scmp.ne.s32.totalorder %s70, %s86
      %p88 = scmp.eq.s32.totalorder %s24, 0
      %p89 = por %p87, %p88
      %s90 = ssub.s32 %s26, %s33
      %p91 = scmp.eq.s32.totalorder %s90, 0
      %s93 = sadd.s32 %s92, 1
      %s94 = scalar_select %p91, %s92, %s93
      %p97 = pneg %p91
      %p98 = scmp.eq.s32.totalorder %s18, 1
      %p99 = por %p97, %p98
      %p100 = scmp.ne.s32.totalorder %s92, %s95
      %p101 = scmp.eq.s32.totalorder %s18, 0
      %p102 = por %p100, %p101
      %p103 = scmp.ne.s32.totalorder %s92, %s95
      %p104 = scmp.eq.s32.totalorder %s23, 1
      %p105 = por %p103, %p104
      %p106 = scmp.ne.s32.totalorder %s95, %s96
      %p107 = scmp.eq.s32.totalorder %s23, 0
      %p108 = por %p106, %p107
      %p109 = scmp.ne.s32.totalorder %s95, %s96
      %p110 = scmp.eq.s32.totalorder %s24, 1
      %p111 = por %p109, %p110
      %p113 = scmp.ne.s32.totalorder %s96, %s112
      %p114 = scmp.eq.s32.totalorder %s24, 0
      %p115 = por %p113, %p114
      %s116 = ssub.s32 %s26, %s33
      %p117 = scmp.eq.s32.totalorder %s116, 0
      %s119 = sadd.s32 %s118, 1
      %s120 = scalar_select %p117, %s118, %s119
      %p123 = pneg %p117
      %p124 = scmp.eq.s32.totalorder %s18, 1
      %p125 = por %p123, %p124
      %p126 = scmp.ne.s32.totalorder %s118, %s121
      %p127 = scmp.eq.s32.totalorder %s18, 0
      %p128 = por %p126, %p127
      %p129 = scmp.ne.s32.totalorder %s118, %s121
      %p130 = scmp.eq.s32.totalorder %s23, 1
      %p131 = por %p129, %p130
      %p132 = scmp.ne.s32.totalorder %s121, %s122
      %p133 = scmp.eq.s32.totalorder %s23, 0
      %p134 = por %p132, %p133
      %p135 = scmp.ne.s32.totalorder %s121, %s122
      %p136 = scmp.eq.s32.totalorder %s24, 1
      %p137 = por %p135, %p136
      %p139 = scmp.ne.s32.totalorder %s122, %s138
      %p140 = scmp.eq.s32.totalorder %s24, 0
      %p141 = por %p139, %p140
      %s143 = sadd.s32 %s142, 1
      %p146 = scmp.eq.s32.totalorder %s18, 1
      %p147 = scmp.ne.s32.totalorder %s142, %s144
      %p148 = scmp.eq.s32.totalorder %s18, 0
      %p149 = por %p147, %p148
      %p150 = scmp.ne.s32.totalorder %s142, %s144
      %p151 = scmp.eq.s32.totalorder %s23, 1
      %p152 = por %p150, %p151
      %p153 = scmp.ne.s32.totalorder %s144, %s145
      %p154 = scmp.eq.s32.totalorder %s23, 0
      %p155 = por %p153, %p154
      %p156 = scmp.ne.s32.totalorder %s144, %s145
      %p157 = scmp.eq.s32.totalorder %s24, 1
      %p158 = por %p156, %p157
      %p160 = scmp.ne.s32.totalorder %s145, %s159
      %p161 = scmp.eq.s32.totalorder %s24, 0
      %p162 = por %p160, %p161
      %s163 = ssub.s32 %s25, %s37
      %p164 = scmp.eq.s32.totalorder %s163, 0
      %s166 = sadd.s32 %s165, 1
      %s167 = scalar_select %p164, %s165, %s166
      %p170 = pneg %p164
      %p171 = scmp.eq.s32.totalorder %s18, 1
      %p172 = por %p170, %p171
      %p173 = scmp.ne.s32.totalorder %s165, %s168
      %p174 = scmp.eq.s32.totalorder %s18, 0
      %p175 = por %p173, %p174
      %p176 = scmp.ne.s32.totalorder %s165, %s168
      %p177 = scmp.eq.s32.totalorder %s23, 1
      %p178 = por %p176, %p177
      %p179 = scmp.ne.s32.totalorder %s168, %s169
      %p180 = scmp.eq.s32.totalorder %s23, 0
      %p181 = por %p179, %p180
      %p182 = scmp.ne.s32.totalorder %s168, %s169
      %p183 = scmp.eq.s32.totalorder %s24, 1
      %p184 = por %p182, %p183
      %p186 = scmp.ne.s32.totalorder %s169, %s185
      %p187 = scmp.eq.s32.totalorder %s24, 0
      %p188 = por %p186, %p187
      %p189 = scmp.le.s32.totalorder 1, %s18
      %p190 = scmp.lt.s32.totalorder %s18, 3
      %p191 = pnand %p189, %p190
      %p192 = pneg %p191
      // Predicated region
      $region9: #{tpu_custom_call.1} parent=5 // pred_check
        _
      $region10: #{tpu_custom_call.1} parent=5 // pred_check_branch
        %194 = sbr.rel (%p191) target = $region12
      $region11: #{tpu_custom_call.1} parent=5 // pred_region
        %s195 = ssub.s32 %s18, 1
        // Predicated region
        $region13: #{tpu_custom_call.1} parent=11 // pred_check
          %p196 = pneg %p82
        $region14: #{tpu_custom_call.1} parent=11 // pred_check_branch
          %198 = sbr.rel (%p196) target = $region16
        $region15: #{tpu_custom_call.1} parent=11 // pred_region
          %s200 = ssub.s32 2048, 2048
          %201 = vsyncadd [#allocation6], %s200
          %s202 = smul.addr %s28, 128
          %s203 = scalar_lea.hbm %s1, %s202
          %s204 = sshll.u32 [#allocation5], 4
          %s205 = int_to_ptr.vmem [resolvable:$true] %s204
          %210 = dma.hbm_to_vmem [thread:$0]  %s203, 2048, %s205, [#allocation6], 128, 128, 8
        $region16: #{tpu_custom_call.1} parent=11 // pred_fallthru
          _
        // Predicated region
        $region17: #{tpu_custom_call.1} parent=11 // pred_check
          %p211 = pneg %p108
        $region18: #{tpu_custom_call.1} parent=11 // pred_check_branch
          %213 = sbr.rel (%p211) target = $region20
        $region19: #{tpu_custom_call.1} parent=11 // pred_region
          %p214 = scmp.lt.s32.totalorder %s28, 0
          %s215 = scalar_select %p214, %s28, 0
          %s216 = scalar_lea.vmem %s2, %s215
        $region20: #{tpu_custom_call.1} parent=11 // pred_fallthru
          _
        // Predicated region
        $region21: #{tpu_custom_call.1} parent=11 // pred_check
          %p217 = pneg %p134
        $region22: #{tpu_custom_call.1} parent=11 // pred_check_branch
          %219 = sbr.rel (%p217) target = $region24
        $region23: #{tpu_custom_call.1} parent=11 // pred_region
          %s220 = smul.u32 16, %s28
          %s222 = ssub.s32 2048, 2048
          %223 = vsyncadd [#allocation6], %s222
          %s224 = smul.addr %s220, 128
          %s225 = scalar_lea.hbm %s3, %s224
          %s226 = sshll.u32 [#allocation7], 4
          %s227 = int_to_ptr.vmem [resolvable:$true] %s226
          %232 = dma.hbm_to_vmem [thread:$0]  %s225, 2048, %s227, [#allocation6], 128, 128, 8
        $region24: #{tpu_custom_call.1} parent=11 // pred_fallthru
          _
        // Predicated region
        $region25: #{tpu_custom_call.1} parent=11 // pred_check
          %p233 = pneg %p155
        $region26: #{tpu_custom_call.1} parent=11 // pred_check_branch
          %235 = sbr.rel (%p233) target = $region28
        $region27: #{tpu_custom_call.1} parent=11 // pred_region
          _
        $region28: #{tpu_custom_call.1} parent=11 // pred_fallthru
          _
      $region12: #{tpu_custom_call.1} parent=5 // pred_fallthru
        _
      %p236 = scmp.lt.s32.totalorder %s18, 2
      // Predicated region
      $region29: #{tpu_custom_call.1} parent=5 // pred_check
        %p237 = pneg %p236
      $region30: #{tpu_custom_call.1} parent=5 // pred_check_branch
        %239 = sbr.rel (%p237) target = $region32
      $region31: #{tpu_custom_call.1} parent=5 // pred_region
        // Predicated region
        $region33: #{tpu_custom_call.1} parent=31 // pred_check
          %p240 = pneg %p50
        $region34: #{tpu_custom_call.1} parent=31 // pred_check_branch
          %242 = sbr.rel (%p240) target = $region36
        $region35: #{tpu_custom_call.1} parent=31 // pred_region
          %s243 = sand.u32 %s40, 1
          %s244 = scalar_lea.sflag [#allocation3], %s243
          %s245 = sand.u32 %s40, 1
          %s246 = smul.addr %s245, 8
          %s247 = scalar_lea.vmem [#allocation2], %s246
          %s249 = ssub.s32 128, 128
          %250 = vsyncadd %s244, %s249
          %s251 = smul.addr %s25, 128
          %s252 = scalar_lea.hbm %s0, %s251
          %s254 = sshll.u32 %s247, 4
          %s255 = int_to_ptr.vmem [resolvable:$true] %s254
          %257 = dma.hbm_to_vmem [thread:$0]  %s252, 128, %s255, %s244
        $region36: #{tpu_custom_call.1} parent=31 // pred_fallthru
          _
      $region32: #{tpu_custom_call.1} parent=5 // pred_fallthru
        _
      %p258 = scmp.le.s32.totalorder 1, %s18
      %p259 = scmp.lt.s32.totalorder %s18, 3
      %p260 = pnand %p258, %p259
      %p261 = pneg %p260
      // Predicated region
      $region37: #{tpu_custom_call.1} parent=5 // pred_check
        _
      $region38: #{tpu_custom_call.1} parent=5 // pred_check_branch
        %263 = sbr.rel (%p260) target = $region40
      $region39: #{tpu_custom_call.1} parent=5 // pred_region
        %s264 = ssub.s32 %s18, 1
        %s265 = sand.u32 %s43, 1
        %s266 = scalar_lea.sflag [#allocation3], %s265
        %s267 = sand.u32 %s43, 1
        %s268 = smul.addr %s267, 8
        %s269 = scalar_lea.vmem [#allocation2], %s268
        // Predicated region
        $region41: #{tpu_custom_call.1} parent=39 // pred_check
          %p270 = pneg %p56
        $region42: #{tpu_custom_call.1} parent=39 // pred_check_branch
          %272 = sbr.rel (%p270) target = $region44
        $region43: #{tpu_custom_call.1} parent=39 // pred_region
          %273 = dma.done %s266, 128
        $region44: #{tpu_custom_call.1} parent=39 // pred_fallthru
          _
        // Predicated region
        $region45: #{tpu_custom_call.1} parent=39 // pred_check
          %p274 = pneg %p82
        $region46: #{tpu_custom_call.1} parent=39 // pred_check_branch
          %276 = sbr.rel (%p274) target = $region48
        $region47: #{tpu_custom_call.1} parent=39 // pred_region
          %277 = dma.done [#allocation6], 2048
        $region48: #{tpu_custom_call.1} parent=39 // pred_fallthru
          _
        // Predicated region
        $region49: #{tpu_custom_call.1} parent=39 // pred_check
          %p278 = pneg %p134
        $region50: #{tpu_custom_call.1} parent=39 // pred_check_branch
          %280 = sbr.rel (%p278) target = $region52
        $region51: #{tpu_custom_call.1} parent=39 // pred_region
          %281 = dma.done [#allocation6], 2048
        $region52: #{tpu_custom_call.1} parent=39 // pred_fallthru
          _
        %s282 = sand.u32 %s43, 1
        %s283 = scalar_lea.sflag [#allocation3], %s282
        %s284 = sand.u32 %s43, 1
        %s285 = smul.addr %s284, 8
        %s286 = scalar_lea.vmem [#allocation2], %s285
        %p287 = pneg %p56
        %p288 = pneg %p53
        %p289 = pneg %p82
        %p290 = pneg %p79
        %p291 = scmp.lt.s32.totalorder %s28, 0
        %s292 = scalar_select %p291, %s28, 0
        %s293 = scalar_lea.vmem %s2, %s292
        %p294 = pneg %p108
        %p295 = pneg %p105
        %p296 = pneg %p134
        %p297 = pneg %p131
        %p298 = pneg %p155
        %p299 = pneg %p152
        %p300 = pneg %p181
        %p301 = pneg %p178
        %s302 = sand.u32 %s168, 1
        %s303 = scalar_lea.sflag [#allocation4], %s302
        %s304 = sand.u32 %s168, 1
        %s305 = smul.addr %s304, 8
        %s306 = scalar_lea.vmem [#allocation8], %s305
        %p307 = scmp.lt.s32.totalorder %s28, 0
        %s308 = scalar_select %p307, %s28, 0
        %s309 = scalar_lea.vmem %s2, %s308
        %s310 = smul.u32 16, %s28
        %v311 = vld [vmem:[%s269] sm:$0xff]
        %v312 = vld [vmem:[#allocation5] sm:$0xff]
        %v313 = vld [vmem:[#allocation5 + $0x8] sm:$0xff]
        %v314 = vld [vmem:[#allocation5 + $0x10] sm:$0xff]
        %v315 = vld [vmem:[#allocation5 + $0x18] sm:$0xff]
        %v316 = vld [vmem:[#allocation5 + $0x20] sm:$0xff]
        %v317 = vld [vmem:[#allocation5 + $0x28] sm:$0xff]
        %v318 = vld [vmem:[#allocation5 + $0x30] sm:$0xff]
        %v319 = vld [vmem:[#allocation5 + $0x38] sm:$0xff]
        %v320 = vld [vmem:[#allocation5 + $0x40] sm:$0xff]
        %v321 = vld [vmem:[#allocation5 + $0x48] sm:$0xff]
        %v322 = vld [vmem:[#allocation5 + $0x50] sm:$0xff]
        %v323 = vld [vmem:[#allocation5 + $0x58] sm:$0xff]
        %v324 = vld [vmem:[#allocation5 + $0x60] sm:$0xff]
        %v325 = vld [vmem:[#allocation5 + $0x68] sm:$0xff]
        %v326 = vld [vmem:[#allocation5 + $0x70] sm:$0xff]
        %v327 = vld [vmem:[#allocation5 + $0x78] sm:$0xff]
        %v328 = vld [vmem:[%s309] sm:$0x1]
        %v330 = vlaneseq
        %v331 = vshrl.u32 %v330, 7
        %v332 = vsub.s32 0, %v331
        %v333 = vrot.slane %v328, %v332
        %335 = vmatprep.subr.mxu0 0.0
        %336 = vmatpush1.msra.mxu0 %v312
        %337 = vmatprep.subr.mxu0 0.0
        %338 = vmatpush1.msra.mxu0 %v313
        %339 = vmatprep.subr.mxu0 0.0
        %340 = vmatpush1.msra.mxu0 %v314
        %341 = vmatprep.subr.mxu0 0.0
        %342 = vmatpush1.msra.mxu0 %v315
        %343 = vmatprep.subr.mxu0 0.0
        %344 = vmatpush1.msra.mxu0 %v316
        %345 = vmatprep.subr.mxu0 0.0
        %346 = vmatpush1.msra.mxu0 %v317
        %347 = vmatprep.subr.mxu0 0.0
        %348 = vmatpush1.msra.mxu0 %v318
        %349 = vmatprep.subr.mxu0 0.0
        %350 = vmatpush1.msra.mxu0 %v319
        %351 = vmatprep.subr.mxu0 0.0
        %352 = vmatpush1.msra.mxu0 %v320
        %353 = vmatprep.subr.mxu0 0.0
        %354 = vmatpush1.msra.mxu0 %v321
        %355 = vmatprep.subr.mxu0 0.0
        %356 = vmatpush1.msra.mxu0 %v322
        %357 = vmatprep.subr.mxu0 0.0
        %358 = vmatpush1.msra.mxu0 %v323
        %359 = vmatprep.subr.mxu0 0.0
        %360 = vmatpush1.msra.mxu0 %v324
        %361 = vmatprep.subr.mxu0 0.0
        %362 = vmatpush1.msra.mxu0 %v325
        %363 = vmatprep.subr.mxu0 0.0
        %364 = vmatpush1.msra.mxu0 %v326
        %365 = vmatprep.subr.mxu0 0.0
        %366 = vmatpush1.msra.mxu0 %v327
        %367 = vmatprep.subr.mxu0 0.0
        %368 = vmatpush1.msra.mxu0 0.0
        %369 = vmatprep.subr.mxu0 0.0
        %370 = vmatpush1.msra.mxu0 0.0
        %371 = vmatprep.subr.mxu0 0.0
        %372 = vmatpush1.msra.mxu0 0.0
        %373 = vmatprep.subr.mxu0 0.0
        %374 = vmatpush1.msra.mxu0 0.0
        %375 = vmatprep.subr.mxu0 0.0
        %376 = vmatpush1.msra.mxu0 0.0
        %377 = vmatprep.subr.mxu0 0.0
        %378 = vmatpush1.msra.mxu0 0.0
        %379 = vmatprep.subr.mxu0 0.0
        %380 = vmatpush1.msra.mxu0 0.0
        %381 = vmatprep.subr.mxu0 0.0
        %382 = vmatpush1.msra.mxu0 0.0
        %383 = vmatprep.subr.mxu0 0.0
        %384 = vmatpush1.msra.mxu0 0.0
        %385 = vmatprep.subr.mxu0 0.0
        %386 = vmatpush1.msra.mxu0 0.0
        %387 = vmatprep.subr.mxu0 0.0
        %388 = vmatpush1.msra.mxu0 0.0
        %389 = vmatprep.subr.mxu0 0.0
        %390 = vmatpush1.msra.mxu0 0.0
        %391 = vmatprep.subr.mxu0 0.0
        %392 = vmatpush1.msra.mxu0 0.0
        %393 = vmatprep.subr.mxu0 0.0
        %394 = vmatpush1.msra.mxu0 0.0
        %395 = vmatprep.subr.mxu0 0.0
        %396 = vmatpush1.msra.mxu0 0.0
        %397 = vmatprep.subr.mxu0 0.0
        %398 = vmatpush1.msra.mxu0 0.0
        %399 = vmatprep.mubr.f32.mxu0 0.0
        %400 = vmatmul.mubr.f32.gmra.mrb[0].mxu0 %v311
        %v401 = vpop.f32.mrb[0].mxu0
        %v402 = vadd.f32 %v333, %v401
        %v403 = vpop.f32.mrb[0].mxu0
        %404 = vdwg.mxu0
        %v405 = vmax.f32 %v402, 0.0
        %v406 = vld [vmem:[#allocation7] sm:$0xff]
        %v407 = vld [vmem:[#allocation7 + $0x8] sm:$0xff]
        %v408 = vld [vmem:[#allocation7 + $0x10] sm:$0xff]
        %v409 = vld [vmem:[#allocation7 + $0x18] sm:$0xff]
        %v410 = vld [vmem:[#allocation7 + $0x20] sm:$0xff]
        %v411 = vld [vmem:[#allocation7 + $0x28] sm:$0xff]
        %v412 = vld [vmem:[#allocation7 + $0x30] sm:$0xff]
        %v413 = vld [vmem:[#allocation7 + $0x38] sm:$0xff]
        %v414 = vld [vmem:[#allocation7 + $0x40] sm:$0xff]
        %v415 = vld [vmem:[#allocation7 + $0x48] sm:$0xff]
        %v416 = vld [vmem:[#allocation7 + $0x50] sm:$0xff]
        %v417 = vld [vmem:[#allocation7 + $0x58] sm:$0xff]
        %v418 = vld [vmem:[#allocation7 + $0x60] sm:$0xff]
        %v419 = vld [vmem:[#allocation7 + $0x68] sm:$0xff]
        %v420 = vld [vmem:[#allocation7 + $0x70] sm:$0xff]
        %v421 = vld [vmem:[#allocation7 + $0x78] sm:$0xff]
        %v422 = vld [vmem:[%s4] sm:$0x1]
        %v424 = vlaneseq
        %v425 = vshrl.u32 %v424, 7
        %v426 = vsub.s32 0, %v425
        %v427 = vrot.slane %v422, %v426
        %429 = vmatprep.subr.mxu0 0.0
        %430 = vmatpush1.msra.mxu0 %v406
        %431 = vmatprep.subr.mxu0 0.0
        %432 = vmatpush1.msra.mxu0 %v407
        %433 = vmatprep.subr.mxu0 0.0
        %434 = vmatpush1.msra.mxu0 %v408
        %435 = vmatprep.subr.mxu0 0.0
        %436 = vmatpush1.msra.mxu0 %v409
        %437 = vmatprep.subr.mxu0 0.0
        %438 = vmatpush1.msra.mxu0 %v410
        %439 = vmatprep.subr.mxu0 0.0
        %440 = vmatpush1.msra.mxu0 %v411
        %441 = vmatprep.subr.mxu0 0.0
        %442 = vmatpush1.msra.mxu0 %v412
        %443 = vmatprep.subr.mxu0 0.0
        %444 = vmatpush1.msra.mxu0 %v413
        %445 = vmatprep.subr.mxu0 0.0
        %446 = vmatpush1.msra.mxu0 %v414
        %447 = vmatprep.subr.mxu0 0.0
        %448 = vmatpush1.msra.mxu0 %v415
        %449 = vmatprep.subr.mxu0 0.0
        %450 = vmatpush1.msra.mxu0 %v416
        %451 = vmatprep.subr.mxu0 0.0
        %452 = vmatpush1.msra.mxu0 %v417
        %453 = vmatprep.subr.mxu0 0.0
        %454 = vmatpush1.msra.mxu0 %v418
        %455 = vmatprep.subr.mxu0 0.0
        %456 = vmatpush1.msra.mxu0 %v419
        %457 = vmatprep.subr.mxu0 0.0
        %458 = vmatpush1.msra.mxu0 %v420
        %459 = vmatprep.subr.mxu0 0.0
        %460 = vmatpush1.msra.mxu0 %v421
        %461 = vmatprep.subr.mxu0 0.0
        %462 = vmatpush1.msra.mxu0 0.0
        %463 = vmatprep.subr.mxu0 0.0
        %464 = vmatpush1.msra.mxu0 0.0
        %465 = vmatprep.subr.mxu0 0.0
        %466 = vmatpush1.msra.mxu0 0.0
        %467 = vmatprep.subr.mxu0 0.0
        %468 = vmatpush1.msra.mxu0 0.0
        %469 = vmatprep.subr.mxu0 0.0
        %470 = vmatpush1.msra.mxu0 0.0
        %471 = vmatprep.subr.mxu0 0.0
        %472 = vmatpush1.msra.mxu0 0.0
        %473 = vmatprep.subr.mxu0 0.0
        %474 = vmatpush1.msra.mxu0 0.0
        %475 = vmatprep.subr.mxu0 0.0
        %476 = vmatpush1.msra.mxu0 0.0
        %477 = vmatprep.subr.mxu0 0.0
        %478 = vmatpush1.msra.mxu0 0.0
        %479 = vmatprep.subr.mxu0 0.0
        %480 = vmatpush1.msra.mxu0 0.0
        %481 = vmatprep.subr.mxu0 0.0
        %482 = vmatpush1.msra.mxu0 0.0
        %483 = vmatprep.subr.mxu0 0.0
        %484 = vmatpush1.msra.mxu0 0.0
        %485 = vmatprep.subr.mxu0 0.0
        %486 = vmatpush1.msra.mxu0 0.0
        %487 = vmatprep.subr.mxu0 0.0
        %488 = vmatpush1.msra.mxu0 0.0
        %489 = vmatprep.subr.mxu0 0.0
        %490 = vmatpush1.msra.mxu0 0.0
        %491 = vmatprep.subr.mxu0 0.0
        %492 = vmatpush1.msra.mxu0 0.0
        %493 = vmatprep.mubr.f32.mxu0 0.0
        %494 = vmatmul.mubr.f32.gmra.mrb[0].mxu0 %v405
        %v495 = vpop.f32.mrb[0].mxu0
        %v496 = vadd.f32 %v427, %v495
        %v497 = vpop.f32.mrb[0].mxu0
        %498 = vdwg.mxu0
        %499 = vst [vmem:[%s306] sm:$0xff] %v496
        %s500 = sand.u32 %s168, 1
        %s501 = scalar_lea.sflag [#allocation4], %s500
        %s502 = sand.u32 %s168, 1
        %s503 = smul.addr %s502, 8
        %s504 = scalar_lea.vmem [#allocation8], %s503
        // Predicated region
        $region53: #{tpu_custom_call.1} parent=39 // pred_check
          %p505 = pneg %p178
        $region54: #{tpu_custom_call.1} parent=39 // pred_check_branch
          %507 = sbr.rel (%p505) target = $region56
        $region55: #{tpu_custom_call.1} parent=39 // pred_region
          %s509 = ssub.s32 128, 128
          %510 = vsyncadd %s501, %s509
          %s511 = smul.addr %s27, 128
          %s512 = scalar_lea.hbm %s5, %s511
          %s514 = sshll.u32 %s504, 4
          %s515 = int_to_ptr.vmem [resolvable:$true] %s514
          %517 = dma.vmem_to_hbm [thread:$0]  %s515, 128, %s512, %s501
        $region56: #{tpu_custom_call.1} parent=39 // pred_fallthru
          _
      $region40: #{tpu_custom_call.1} parent=5 // pred_fallthru
        _
      %p518 = scmp.le.s32.totalorder 2, %s18
      // Predicated region
      $region57: #{tpu_custom_call.1} parent=5 // pred_check
        %p519 = pneg %p518
      $region58: #{tpu_custom_call.1} parent=5 // pred_check_branch
        %521 = sbr.rel (%p519) target = $region60
      $region59: #{tpu_custom_call.1} parent=5 // pred_region
        %s522 = ssub.s32 %s18, 2
        // Predicated region
        $region61: #{tpu_custom_call.1} parent=59 // pred_check
          %p523 = pneg %p184
        $region62: #{tpu_custom_call.1} parent=59 // pred_check_branch
          %525 = sbr.rel (%p523) target = $region64
        $region63: #{tpu_custom_call.1} parent=59 // pred_region
          %s526 = sand.u32 %s169, 1
          %s527 = scalar_lea.sflag [#allocation4], %s526
          %s528 = sand.u32 %s169, 1
          %s529 = smul.addr %s528, 8
          %s530 = scalar_lea.vmem [#allocation8], %s529
          %531 = dma.done %s527, 128
        $region64: #{tpu_custom_call.1} parent=59 // pred_fallthru
          _
      $region60: #{tpu_custom_call.1} parent=5 // pred_fallthru
        _
    $region6: #{tpu_custom_call.1} parent=1 // loop_footer
      %s22 = sadd.s32 1, %s18
    $region7: #{tpu_custom_call.1} parent=1 // loop_footer_branch
      %17 = sbr.rel target = $region3
    $region8: #{tpu_custom_call.1} parent=1 // loop_exit
      _
    %532 = vsyncpa [#allocation3], 1
    %s533 = scalar_lea.sflag [#allocation3], 1
    %534 = vsyncpa %s533, 1
    %535 = vsyncpa [#allocation6], 1
    %536 = vsyncpa [#allocation4], 1
    %s537 = scalar_lea.sflag [#allocation4], 1
    %538 = vsyncpa %s537, 1

</llo_original>
